<compile_context>
chip_gen: v5e
topology: v5e:2x2
jax: 0.10.0
libtpu: 0.0.40
codegen_flags: <defaults>
</compile_context>

<pallas_src>
import jax
import jax.numpy as jnp
from jax.experimental import pallas as pl
from jax.experimental.pallas import tpu as pltpu

_LANE = 128   # vreg lane width / padding target for row (parallel) axes


# ----------------------------------------------------------------------------
# Kernels
# ----------------------------------------------------------------------------
def _xform_kernel(x_ref, w_ref, o_ref):
    """xt = X @ Theta, one node-row tile per grid step."""
    cdt = w_ref.dtype
    o_ref[...] = jnp.dot(x_ref[...].astype(cdt), w_ref[...],
                         preferred_element_type=jnp.float32).astype(o_ref.dtype)


def _node_to_edge_kernel(ht_ref, xt_ref, binv_ref, e_ref, acc_ref):
    """e = b_inv * (H^T @ xt).

    grid = (edge row tiles [parallel], node blocks [arbitrary reduction]).
    b_inv stays f32 and scales the f32 accumulator (normalization never
    rounded into the incidence matrix).
    """
    k = pl.program_id(1)

    @pl.when(k == 0)
    def _():
        acc_ref[...] = jnp.zeros_like(acc_ref)

    cdt = xt_ref.dtype
    acc_ref[...] += jnp.dot(ht_ref[...].astype(cdt), xt_ref[...],
                            preferred_element_type=jnp.float32)

    @pl.when(k == pl.num_programs(1) - 1)
    def _():
        e_ref[...] = (binv_ref[...] * acc_ref[...]).astype(e_ref.dtype)


def _edge_to_node_kernel(h_ref, e_ref, dinv_ref, b_ref, wn_ref, bn_ref,
                         o_ref, acc_ref):
    """o = relu(d_inv * (H @ e) + b_layer) @ W_next + b_next.

    grid = (node row tiles [parallel], edge blocks [arbitrary reduction]).
    Used twice: layer-1 finalize fuses the Theta2 transform (b_next = 0),
    layer-2 finalize fuses the classifier (W_next = Wc padded to 128 lanes).
    """
    k = pl.program_id(1)

    @pl.when(k == 0)
    def _():
        acc_ref[...] = jnp.zeros_like(acc_ref)

    cdt = e_ref.dtype
    acc_ref[...] += jnp.dot(h_ref[...].astype(cdt), e_ref[...],
                            preferred_element_type=jnp.float32)

    @pl.when(k == pl.num_programs(1) - 1)
    def _():
        h_out = jnp.maximum(dinv_ref[...] * acc_ref[...] + b_ref[...], 0.0)
        o_ref[...] = (jnp.dot(h_out.astype(cdt), wn_ref[...],
                              preferred_element_type=jnp.float32)
                      + bn_ref[...]).astype(o_ref.dtype)


# ----------------------------------------------------------------------------
# Wrapper
# ----------------------------------------------------------------------------
def _round_up(v, m):
    return (v + m - 1) // m * m


def _pad2d(a, rows, cols):
    return jnp.pad(a, ((0, rows - a.shape[0]), (0, cols - a.shape[1])))


def _pick_tile(dim):
    """Largest of 512/256/128 dividing dim (dim is a multiple of 128)."""
    for t in (512, 256, 128):
        if dim % t == 0:
            return t
    return dim


def _vmem_limit_bytes():
    """Per-generation VMEM budget (headroom for compiler / double-buffering)."""
    try:
        cap = pltpu.get_tpu_info().vmem_capacity_bytes
    except Exception:
        cap = 64 * 1024 * 1024
    return int(min(max(cap - 16 * 1024 * 1024, 32 * 1024 * 1024),
                   110 * 1024 * 1024))


def hgnn_forward(x, H, params, *, compute_dtype=jnp.float32):
    """Fused HGNN forward. Returns [N, 1] float32."""
    N, Fin = x.shape
    _, E = H.shape
    hidden = params["w1"].shape[1]

    # Degrees + masked reciprocals in the wrapper (tiny XLA reductions), kept
    # in f32 and applied as row scalings inside the kernels (PyG 1/0 -> 0).
    Hf = H.astype(jnp.float32)
    node_deg = jnp.sum(Hf, axis=1, keepdims=True)            # [N, 1]
    edge_deg = jnp.sum(Hf, axis=0, keepdims=True).T          # [E, 1]
    d_inv = jnp.where(node_deg > 0, 1.0 / node_deg, 0.0)
    b_inv = jnp.where(edge_deg > 0, 1.0 / edge_deg, 0.0)

    Np = _round_up(N, _LANE)
    Ep = _round_up(E, _LANE)
    # Contraction dim padded only to the dtype minimum sublane tile.
    kmin = 16 if compute_dtype == jnp.bfloat16 else 8
    Fp = _round_up(Fin, kmin)
    Hd = hidden            # real size (lane dim < 128 is allowed: full-dim block)
    Cp = _LANE             # classifier output padded to one full lane width

    TN = _pick_tile(Np)
    TE = _pick_tile(Ep)

    # Incidence always in bf16 (0/1 exact) -> half the dominant DMA bytes.
    Hp = _pad2d(H, Np, Ep).astype(jnp.bfloat16)
    Htp = jnp.transpose(Hp)

    xp = _pad2d(x, Np, Fp).astype(compute_dtype)
    d_invp = _pad2d(d_inv, Np, 1).astype(jnp.float32)
    b_invp = _pad2d(b_inv, Ep, 1).astype(jnp.float32)
    w1 = _pad2d(params["w1"], Fp, Hd).astype(compute_dtype)
    w2 = params["w2"].astype(compute_dtype)
    wc = _pad2d(params["wc"], Hd, Cp).astype(compute_dtype)
    b1 = params["b1"].astype(jnp.float32)
    b2 = params["b2"].astype(jnp.float32)
    bc = _pad2d(params["bc"], 1, Cp).astype(jnp.float32)
    zero_bn = jnp.zeros((1, Hd), jnp.float32)   # layer-1 fused transform: no bias

    vmem_limit = _vmem_limit_bytes()
    cp1 = pltpu.CompilerParams(dimension_semantics=("parallel",),
                               vmem_limit_bytes=vmem_limit)
    cp2 = pltpu.CompilerParams(dimension_semantics=("parallel", "arbitrary"),
                               vmem_limit_bytes=vmem_limit)

    # --- xt1 = X @ Theta1 (node-row tiled) ----------------------------------
    xt1 = pl.pallas_call(
        _xform_kernel,
        out_shape=jax.ShapeDtypeStruct((Np, Hd), compute_dtype),
        grid=(Np // TN,),
        in_specs=[pl.BlockSpec((TN, Fp), lambda i: (i, 0)),
                  pl.BlockSpec((Fp, Hd), lambda i: (0, 0))],
        out_specs=pl.BlockSpec((TN, Hd), lambda i: (i, 0)),
        compiler_params=cp1,
    )(xp, w1)

    # --- e = b_inv * (H^T @ xt): edge tiles x node reduction ----------------
    def n2e(xt):
        return pl.pallas_call(
            _node_to_edge_kernel,
            out_shape=jax.ShapeDtypeStruct((Ep, Hd), compute_dtype),
            grid=(Ep // TE, Np // TN),
            in_specs=[pl.BlockSpec((TE, TN), lambda i, k: (i, k)),
                      pl.BlockSpec((TN, Hd), lambda i, k: (k, 0)),
                      pl.BlockSpec((TE, 1), lambda i, k: (i, 0))],
            out_specs=pl.BlockSpec((TE, Hd), lambda i, k: (i, 0)),
            scratch_shapes=[pltpu.VMEM((TE, Hd), jnp.float32)],
            compiler_params=cp2,
        )(Htp, xt, b_invp)

    # --- o = relu(d_inv*(H @ e) + b) @ W_next + b_next: node tiles x edge red.
    def e2n(e, b_layer, w_next, b_next, wout):
        return pl.pallas_call(
            _edge_to_node_kernel,
            out_shape=jax.ShapeDtypeStruct((Np, wout), compute_dtype),
            grid=(Np // TN, Ep // TE),
            in_specs=[pl.BlockSpec((TN, TE), lambda i, k: (i, k)),
                      pl.BlockSpec((TE, Hd), lambda i, k: (k, 0)),
                      pl.BlockSpec((TN, 1), lambda i, k: (i, 0)),
                      pl.BlockSpec((1, Hd), lambda i, k: (0, 0)),
                      pl.BlockSpec((Hd, wout), lambda i, k: (0, 0)),
                      pl.BlockSpec((1, wout), lambda i, k: (0, 0))],
            out_specs=pl.BlockSpec((TN, wout), lambda i, k: (i, 0)),
            scratch_shapes=[pltpu.VMEM((TN, Hd), jnp.float32)],
            compiler_params=cp2,
        )(Hp, e, d_invp, b_layer, w_next, b_next)

    e1 = n2e(xt1)
    xt2 = e2n(e1, b1, w2, zero_bn, Hd)          # = relu(conv1 + b1) @ Theta2
    e2 = n2e(xt2)
    out = e2n(e2, b2, wc, bc, Cp)               # lane-dense classifier slab

    return out[:N, :1].astype(jnp.float32)


# ----------------------------------------------------------------------------
# Reference + test
# ----------------------------------------------------------------------------
def _glorot(key, shape):
    fan_in, fan_out = shape
    limit = (6.0 / (fan_in + fan_out)) ** 0.5
    return jax.random.uniform(key, shape, jnp.float32, -limit, limit)


def make_params(key, in_channels, hidden_size):
    k1, k2, k3, k4 = jax.random.split(key, 4)
    return {
        "w1": _glorot(k1, (in_channels, hidden_size)),
        "b1": jnp.zeros((1, hidden_size), jnp.float32),
        "w2": _glorot(k2, (hidden_size, hidden_size)),
        "b2": jnp.zeros((1, hidden_size), jnp.float32),
        "wc": _glorot(k3, (hidden_size, 1)),
        "bc": jax.random.uniform(k4, (1, 1), jnp.float32, -0.1, 0.1),
    }


def hgnn_reference(x, H, p):
    node_deg = jnp.sum(H, axis=1, keepdims=True)
    edge_deg = jnp.sum(H, axis=0, keepdims=True)
    d_inv = jnp.where(node_deg > 0, 1.0 / node_deg, 0.0)
    b_inv = jnp.where(edge_deg > 0, 1.0 / edge_deg, 0.0)

    def hconv(xin, w, b):
        xt = xin @ w
        e = (H * b_inv).T @ xt
        return (H @ e) * d_inv + b

    h1 = jnp.maximum(hconv(x, p["w1"], p["b1"]), 0.0)
    h2 = jnp.maximum(hconv(h1, p["w2"], p["b2"]), 0.0)
    return h2 @ p["wc"] + p["bc"]


if __name__ == "__main__":
    key = jax.random.PRNGKey(0)
    k_x, k_h, k_p = jax.random.split(key, 3)

    N, E = 16, 8                   # nodes, hyperedges
    in_channels, hidden = 4, 32

    x = jax.random.normal(k_x, (N, in_channels), jnp.float32)
    # Dense incidence matrix (its nonzeros == PyTorch's hyperedge_index list).
    H = (jax.random.uniform(k_h, (N, E)) < 0.35).astype(jnp.float32)
    params = make_params(k_p, in_channels, hidden)

    ref = hgnn_reference(x, H, params)

    # f32 activation/weight path (H/Ht still bf16 -- 0/1 is exact).
    out = jax.block_until_ready(hgnn_forward(x, H, params))
    assert out.shape == (N, 1)
    assert jnp.allclose(out, ref, atol=5e-4, rtol=5e-4), \
        float(jnp.max(jnp.abs(out - ref)))

    # bf16 activation/weight path (f32 MXU accumulation, f32 normalization).
    out_bf16 = jax.block_until_ready(
        hgnn_forward(x, H, params, compute_dtype=jnp.bfloat16))
    assert float(jnp.max(jnp.abs(out_bf16 - ref))) < 5e-2

    print("KERNEL_OK")
</pallas_src>

<mosaic_0001>
module attributes {stable_mosaic.version = 11 : i64} {
  func.func @_xform_kernel(%arg0: i32, %arg1: memref<128x8xf32, #tpu.memory_space<vmem>>, %arg2: memref<8x32xf32, #tpu.memory_space<vmem>>, %arg3: memref<128x32xf32, #tpu.memory_space<vmem>>) attributes {dimension_semantics = [#tpu.dimension_semantics<parallel>], iteration_bounds = array<i64: 1>, scalar_prefetch = 0 : i64, scratch_operands = 0 : i64, tpu.core_type = #tpu.core_type<tc>, window_params = [{transform_indices = @transform_0, window_bounds = array<i64: 128, 8>}, {pipeline_mode = #tpu.pipeline_mode<synchronous>, transform_indices = @transform_1, window_bounds = array<i64: 8, 32>}, {transform_indices = @transform_2, window_bounds = array<i64: 128, 32>}]} {
    %c0 = arith.constant 0 : index
    %c0_0 = arith.constant 0 : index
    %0 = vector.load %arg1[%c0, %c0_0] : memref<128x8xf32, #tpu.memory_space<vmem>>, vector<128x8xf32>
    %c0_1 = arith.constant 0 : index
    %c0_2 = arith.constant 0 : index
    %1 = vector.load %arg2[%c0_1, %c0_2] : memref<8x32xf32, #tpu.memory_space<vmem>>, vector<8x32xf32>
    %cst = arith.constant dense<0.000000e+00> : vector<128x32xf32>
    %2 = tpu.matmul %0, %1, %cst {dimension_numbers = #tpu.dot_dimension_numbers<[1], [0], [0], [1], [0, 0, 1, 1], [], []>} : vector<128x8xf32>, vector<8x32xf32>, vector<128x32xf32> -> vector<128x32xf32>
    %c0_3 = arith.constant 0 : index
    %c0_4 = arith.constant 0 : index
    %3 = vector.load %arg3[%c0_3, %c0_4] : memref<128x32xf32, #tpu.memory_space<vmem>>, vector<128x32xf32>
    tpu.vector_store %arg3[%c0_3, %c0_4], %2 {strides = array<i32>} : memref<128x32xf32, #tpu.memory_space<vmem>>, vector<128x32xf32>,
    return
  }
  func.func @transform_0(%arg0: i32) -> (i32, i32) {
    %c0_i32 = arith.constant 0 : i32
    %c0_i32_0 = arith.constant 0 : i32
    return %arg0, %c0_i32 : i32, i32
  }
  func.func @transform_1(%arg0: i32) -> (i32, i32) {
    %c0_i32 = arith.constant 0 : i32
    %c0_i32_0 = arith.constant 0 : i32
    %c0_i32_1 = arith.constant 0 : i32
    return %c0_i32, %c0_i32_0 : i32, i32
  }
  func.func @transform_2(%arg0: i32) -> (i32, i32) {
    %c0_i32 = arith.constant 0 : i32
    %c0_i32_0 = arith.constant 0 : i32
    return %arg0, %c0_i32 : i32, i32
  }
}

</mosaic_0001>

<llo_original>
// kernel: tpu_custom_call.1
$region0: #{tpu_custom_call.1}
  #allocation0 [shape = 'u32[]', space=smem, size = 0x4, offset = 0x4, fixed_abs, tag = 'smem constant byte address 0x4 - core index']
  #allocation1 [shape = 'u32[72,128]{1,0:T(1,128)}', space=vmem, size = 0x9000, scoped, tag = 'internal scratch']
  %s0 = inlined_call_operand.vmem [shape: f32[128,8], index: 0, kind: input, shape index: {}]
  %s1 = inlined_call_operand.vmem [shape: f32[8,32], index: 1, kind: input, shape index: {}]
  %s2 = inlined_call_operand.vmem [shape: f32[128,32], index: 2, kind: output, shape index: {}]
  %s3 = sld [smem:[#allocation0]]
  $region18: #{tpu_custom_call.1} parent=0
    _
  %s5 = ssub.s32 1, %s3
  %s6 = scalar_select 0, %s5, %s3
  // Predicated region
  $region2: #{tpu_custom_call.1} parent=0 // pred_check
    _
  $region3: #{tpu_custom_call.1} parent=0 // pred_check_branch
    %8 = sbr.rel (0) target = $region5
  $region4: #{tpu_custom_call.1} parent=0 // pred_region
    _
  $region5: #{tpu_custom_call.1} parent=0 // pred_fallthru
    _
  // Predicated region
  $region6: #{tpu_custom_call.1} parent=0 // pred_check
    _
  $region7: #{tpu_custom_call.1} parent=0 // pred_check_branch
    %10 = sbr.rel (0) target = $region9
  $region8: #{tpu_custom_call.1} parent=0 // pred_region
    _
  $region9: #{tpu_custom_call.1} parent=0 // pred_fallthru
    _
  %v11 = vld [vmem:[%s0] sm:$0xff]
  %v12 = vld [vmem:[%s0 + $0x8] sm:$0xff]
  %v13 = vld [vmem:[%s0 + $0x10] sm:$0xff]
  %v14 = vld [vmem:[%s0 + $0x18] sm:$0xff]
  %v15 = vld [vmem:[%s0 + $0x20] sm:$0xff]
  %v16 = vld [vmem:[%s0 + $0x28] sm:$0xff]
  %v17 = vld [vmem:[%s0 + $0x30] sm:$0xff]
  %v18 = vld [vmem:[%s0 + $0x38] sm:$0xff]
  %v19 = vld [vmem:[%s0 + $0x40] sm:$0xff]
  %v20 = vld [vmem:[%s0 + $0x48] sm:$0xff]
  %v21 = vld [vmem:[%s0 + $0x50] sm:$0xff]
  %v22 = vld [vmem:[%s0 + $0x58] sm:$0xff]
  %v23 = vld [vmem:[%s0 + $0x60] sm:$0xff]
  %v24 = vld [vmem:[%s0 + $0x68] sm:$0xff]
  %v25 = vld [vmem:[%s0 + $0x70] sm:$0xff]
  %v26 = vld [vmem:[%s0 + $0x78] sm:$0xff]
  %v27 = vld [vmem:[%s1] sm:$0xff]
  %vm28 = vcmask 64512
  %v30 = vsel %vm28, %v11, 0
  %v33 = vsel %vm28, %v12, 0
  %v36 = vsel %vm28, %v13, 0
  %v39 = vsel %vm28, %v14, 0
  %v42 = vsel %vm28, %v15, 0
  %v45 = vsel %vm28, %v16, 0
  %v48 = vsel %vm28, %v17, 0
  %v51 = vsel %vm28, %v18, 0
  %v54 = vsel %vm28, %v19, 0
  %v57 = vsel %vm28, %v20, 0
  %v60 = vsel %vm28, %v21, 0
  %v63 = vsel %vm28, %v22, 0
  %v66 = vsel %vm28, %v23, 0
  %v69 = vsel %vm28, %v24, 0
  %v72 = vsel %vm28, %v25, 0
  %v75 = vsel %vm28, %v26, 0
  %77 = vmatpush.msra.mxu0 0.0
  %78 = vmatpush.msra.mxu0 0.0
  %79 = vmatpush.msra.mxu0 0.0
  %80 = vmatpush.msra.mxu0 0.0
  %81 = vmatpush.msra.mxu0 0.0
  %82 = vmatpush.msra.mxu0 0.0
  %83 = vmatpush.msra.mxu0 0.0
  %84 = vmatpush.msra.mxu0 0.0
  %85 = vmatpush.msra.mxu0 0.0
  %86 = vmatpush.msra.mxu0 0.0
  %87 = vmatpush.msra.mxu0 0.0
  %88 = vmatpush.msra.mxu0 0.0
  %89 = vmatpush.msra.mxu0 0.0
  %90 = vmatpush.msra.mxu0 0.0
  %91 = vmatpush.msra.mxu0 0.0
  %92 = vmatpush.msra.mxu0 %v27
  %93 = vmatmul.f32.gmra.mxu0 %v30
  %v94 = vpop.f32.mrf.mxu0
  %v95 = vadd.f32 0.0, %v94
  %96 = vmatmul.f32.gmra.mxu0 %v33
  %v97 = vpop.f32.mrf.mxu0
  %v98 = vadd.f32 0.0, %v97
  %99 = vmatmul.f32.gmra.mxu0 %v36
  %v100 = vpop.f32.mrf.mxu0
  %v101 = vadd.f32 0.0, %v100
  %102 = vmatmul.f32.gmra.mxu0 %v39
  %v103 = vpop.f32.mrf.mxu0
  %v104 = vadd.f32 0.0, %v103
  %105 = vmatmul.f32.gmra.mxu0 %v42
  %v106 = vpop.f32.mrf.mxu0
  %v107 = vadd.f32 0.0, %v106
  %108 = vmatmul.f32.gmra.mxu0 %v45
  %v109 = vpop.f32.mrf.mxu0
  %v110 = vadd.f32 0.0, %v109
  %111 = vmatmul.f32.gmra.mxu0 %v48
  %v112 = vpop.f32.mrf.mxu0
  %v113 = vadd.f32 0.0, %v112
  %114 = vmatmul.f32.gmra.mxu0 %v51
  %v115 = vpop.f32.mrf.mxu0
  %v116 = vadd.f32 0.0, %v115
  %117 = vmatmul.f32.gmra.mxu0 %v54
  %v118 = vpop.f32.mrf.mxu0
  %v119 = vadd.f32 0.0, %v118
  %120 = vmatmul.f32.gmra.mxu0 %v57
  %v121 = vpop.f32.mrf.mxu0
  %v122 = vadd.f32 0.0, %v121
  %123 = vmatmul.f32.gmra.mxu0 %v60
  %v124 = vpop.f32.mrf.mxu0
  %v125 = vadd.f32 0.0, %v124
  %126 = vmatmul.f32.gmra.mxu0 %v63
  %v127 = vpop.f32.mrf.mxu0
  %v128 = vadd.f32 0.0, %v127
  %129 = vmatmul.f32.gmra.mxu0 %v66
  %v130 = vpop.f32.mrf.mxu0
  %v131 = vadd.f32 0.0, %v130
  %132 = vmatmul.f32.gmra.mxu0 %v69
  %v133 = vpop.f32.mrf.mxu0
  %v134 = vadd.f32 0.0, %v133
  %135 = vmatmul.f32.gmra.mxu0 %v72
  %v136 = vpop.f32.mrf.mxu0
  %v137 = vadd.f32 0.0, %v136
  %138 = vmatmul.f32.gmra.mxu0 %v75
  %v139 = vpop.f32.mrf.mxu0
  %v140 = vadd.f32 0.0, %v139
  %141 = vdwg.mxu0
  %vm142 = vcmask 261120
  %143 = vst.msk [vmem:[%s2] sm:$0xff] %vm142, %v95
  %144 = vst.msk [vmem:[%s2 + $0x8] sm:$0xff] %vm142, %v98
  %145 = vst.msk [vmem:[%s2 + $0x10] sm:$0xff] %vm142, %v101
  %146 = vst.msk [vmem:[%s2 + $0x18] sm:$0xff] %vm142, %v104
  %147 = vst.msk [vmem:[%s2 + $0x20] sm:$0xff] %vm142, %v107
  %148 = vst.msk [vmem:[%s2 + $0x28] sm:$0xff] %vm142, %v110
  %149 = vst.msk [vmem:[%s2 + $0x30] sm:$0xff] %vm142, %v113
  %150 = vst.msk [vmem:[%s2 + $0x38] sm:$0xff] %vm142, %v116
  %151 = vst.msk [vmem:[%s2 + $0x40] sm:$0xff] %vm142, %v119
  %152 = vst.msk [vmem:[%s2 + $0x48] sm:$0xff] %vm142, %v122
  %153 = vst.msk [vmem:[%s2 + $0x50] sm:$0xff] %vm142, %v125
  %154 = vst.msk [vmem:[%s2 + $0x58] sm:$0xff] %vm142, %v128
  %155 = vst.msk [vmem:[%s2 + $0x60] sm:$0xff] %vm142, %v131
  %156 = vst.msk [vmem:[%s2 + $0x68] sm:$0xff] %vm142, %v134
  %157 = vst.msk [vmem:[%s2 + $0x70] sm:$0xff] %vm142, %v137
  %158 = vst.msk [vmem:[%s2 + $0x78] sm:$0xff] %vm142, %v140
  // Predicated region
  $region10: #{tpu_custom_call.1} parent=0 // pred_check
    _
  $region11: #{tpu_custom_call.1} parent=0 // pred_check_branch
    %160 = sbr.rel (0) target = $region13
  $region12: #{tpu_custom_call.1} parent=0 // pred_region
    _
  $region13: #{tpu_custom_call.1} parent=0 // pred_fallthru
    _
  // Predicated region
  $region14: #{tpu_custom_call.1} parent=0 // pred_check
    _
  $region15: #{tpu_custom_call.1} parent=0 // pred_check_branch
    %162 = sbr.rel (0) target = $region17
  $region16: #{tpu_custom_call.1} parent=0 // pred_region
    _
  $region17: #{tpu_custom_call.1} parent=0 // pred_fallthru
    _

</llo_original>
